<compile_context>
chip_gen: v7x
topology: tpu7x:2x2x1
jax: 0.10.0
libtpu: 0.0.40
codegen_flags: <defaults>
</compile_context>

<pallas_src>
import functools

import jax
import jax.numpy as jnp
from jax.experimental import pallas as pl
from jax.experimental.pallas import tpu as pltpu


def _round_up(x, m):
    return (x + m - 1) // m * m


# ------------------------------ Pallas kernel --------------------------------
def _fused_gae_encoder_kernel(adj_ref, x_ref, w1_ref, b1_ref, w2_ref, b2_ref,
                              out_ref, xw_scr, h_scr, hw2_scr, *, tm):
    """Two-phase fused encoder.

    grid = (2, n_row_tiles); phase = program_id(0), row tile = program_id(1).
      phase 0: (i==0) XW = X @ W1 -> scratch; every i: H[i*tm:(i+1)*tm] =
               relu(A_hat[tile] @ XW + b1) -> scratch.
      phase 1: (i==0) HW2 = H @ W2 -> scratch; every i: out[tile] =
               A_hat[tile] @ HW2 + b2.
    All matmuls accumulate in f32 on the MXU.
    """
    phase = pl.program_id(0)
    i = pl.program_id(1)

    # ---- phase 0: hidden layer ----
    @pl.when(jnp.logical_and(phase == 0, i == 0))
    def _():
        xw_scr[...] = jnp.dot(x_ref[...], w1_ref[...],
                              preferred_element_type=jnp.float32)

    @pl.when(phase == 0)
    def _():
        h = jnp.dot(adj_ref[...], xw_scr[...].astype(adj_ref.dtype),
                    preferred_element_type=jnp.float32)
        h = jnp.maximum(h + b1_ref[...], 0.0)          # bias + ReLU (f32 VPU)
        row0 = pl.multiple_of(i * tm, tm)              # tm is a multiple of 8
        h_scr[pl.ds(row0, tm), :] = h

    # ---- phase 1: output layer (single pass; mu|logvar concatenated) ----
    @pl.when(jnp.logical_and(phase == 1, i == 0))
    def _():
        hw2_scr[...] = jnp.dot(h_scr[...].astype(w2_ref.dtype), w2_ref[...],
                               preferred_element_type=jnp.float32)

    @pl.when(phase == 1)
    def _():
        out = jnp.dot(adj_ref[...], hw2_scr[...].astype(adj_ref.dtype),
                      preferred_element_type=jnp.float32)
        out_ref[...] = (out + b2_ref[...]).astype(out_ref.dtype)


def gae_encoder_forward(adj, x, w1, b1, w2, b2, *, tm=None,
                        compute_dtype=jnp.float32):
    """Fused  out = A_hat @ relu(A_hat @ (X @ W1) + b1) @ W2 + b2  in one kernel."""
    n, in_c = x.shape
    hidden = w1.shape[1]
    out_c = w2.shape[1]

    # Row tile: whole (8-aligned) problem when small, 256 rows otherwise
    # (MXU-aligned on v6e/v7x; fine on v5e's 128-wide MXU as well).
    if tm is None:
        tm = _round_up(n, 8) if n <= 256 else 256
    n_pad = _round_up(n, tm)
    in_pad = _round_up(in_c, 128)       # lane-dense feature dims
    hid_pad = _round_up(hidden, 128)
    out_pad = _round_up(out_c, 128)

    f32 = jnp.float32
    adj_p = jnp.zeros((n_pad, n_pad), f32).at[:n, :n].set(adj).astype(compute_dtype)
    x_p = jnp.zeros((n_pad, in_pad), f32).at[:n, :in_c].set(x).astype(compute_dtype)
    w1_p = jnp.zeros((in_pad, hid_pad), f32).at[:in_c, :hidden].set(w1).astype(compute_dtype)
    b1_p = jnp.zeros((1, hid_pad), f32).at[0, :hidden].set(b1)
    w2_p = jnp.zeros((hid_pad, out_pad), f32).at[:hidden, :out_c].set(w2).astype(compute_dtype)
    b2_p = jnp.zeros((1, out_pad), f32).at[0, :out_c].set(b2)

    n_tiles = n_pad // tm
    kernel = functools.partial(_fused_gae_encoder_kernel, tm=tm)

    out = pl.pallas_call(
        kernel,
        out_shape=jax.ShapeDtypeStruct((n_pad, out_pad), jnp.float32),
        grid_spec=pltpu.PrefetchScalarGridSpec(
            num_scalar_prefetch=0,
            grid=(2, n_tiles),                               # (phase, row tile)
            in_specs=[
                pl.BlockSpec((tm, n_pad), lambda p, i: (i, 0)),        # A_hat row tile
                pl.BlockSpec((n_pad, in_pad), lambda p, i: (0, 0)),    # X (resident)
                pl.BlockSpec((in_pad, hid_pad), lambda p, i: (0, 0)),  # W1
                pl.BlockSpec((1, hid_pad), lambda p, i: (0, 0)),       # b1
                pl.BlockSpec((hid_pad, out_pad), lambda p, i: (0, 0)), # W2 (= [Wmu|Wlv])
                pl.BlockSpec((1, out_pad), lambda p, i: (0, 0)),       # b2
            ],
            # Phase 0 parks on block 0 and never writes it; phase 1 writes every
            # row tile exactly once -> no garbage write-backs, lane-dense stores.
            out_specs=pl.BlockSpec((tm, out_pad), lambda p, i: (i * p, 0)),
            scratch_shapes=[
                pltpu.VMEM((n_pad, hid_pad), jnp.float32),   # XW
                pltpu.VMEM((n_pad, hid_pad), jnp.float32),   # H = relu(A XW + b1)
                pltpu.VMEM((n_pad, out_pad), jnp.float32),   # H @ W2
            ],
        ),
        # Both grid axes carry cross-iteration deps through the scratch H, so
        # they must stay "arbitrary" (sequential on one TensorCore).
        # Note: raise vmem_limit_bytes (e.g. 96<<20 on v6e, <=48<<20 on v7x)
        # if tm / n_pad are scaled far beyond the sizes used here.
        compiler_params=pltpu.CompilerParams(
            dimension_semantics=("arbitrary", "arbitrary")),
    )(adj_p, x_p, w1_p, b1_p, w2_p, b2_p)

    return out[:n, :out_c]


# -------------------------------- JAX glue -----------------------------------
def gcn_norm_dense_adj(edge_index, num_nodes):
    """Dense A_hat = D^{-1/2} (A + I) D^{-1/2} (PyG GCNConv normalization)."""
    src = edge_index[0]
    dst = edge_index[1]
    a = jnp.zeros((num_nodes, num_nodes), jnp.float32)
    a = a.at[dst, src].add(1.0)                    # message j -> i lands in A[i, j]
    a = a + jnp.eye(num_nodes, dtype=jnp.float32)  # self-loops
    deg = a.sum(axis=1)
    dinv = jnp.where(deg > 0.0, jax.lax.rsqrt(deg), 0.0)
    return dinv[:, None] * a * dinv[None, :]


def _glorot(key, shape):
    fan_in, fan_out = shape
    lim = (6.0 / (fan_in + fan_out)) ** 0.5
    return jax.random.uniform(key, shape, jnp.float32, -lim, lim)


class GAEEncoderPallas:
    """Pallas port of GAE_Encoder (weights initialized deterministically)."""

    def __init__(self, in_channels, out_channels, model_type, key,
                 compute_dtype=jnp.float32):
        if model_type not in ("GAE", "VGAE"):
            raise ValueError(model_type)
        self.model_type = model_type
        self.out_channels = out_channels
        self.compute_dtype = compute_dtype
        hidden = 2 * out_channels
        k1, k2, k3 = jax.random.split(key, 3)
        self.w1 = _glorot(k1, (in_channels, hidden))
        self.b1 = jnp.zeros((hidden,), jnp.float32)
        if model_type == "GAE":
            self.w2 = _glorot(k2, (hidden, out_channels))
            self.b2 = jnp.zeros((out_channels,), jnp.float32)
            self._w2c, self._b2c = self.w2, self.b2
        else:  # VGAE: fuse mu / logvar heads into one projection
            self.w_mu = _glorot(k2, (hidden, out_channels))
            self.b_mu = jnp.zeros((out_channels,), jnp.float32)
            self.w_lv = _glorot(k3, (hidden, out_channels))
            self.b_lv = jnp.zeros((out_channels,), jnp.float32)
            self._w2c = jnp.concatenate([self.w_mu, self.w_lv], axis=1)
            self._b2c = jnp.concatenate([self.b_mu, self.b_lv], axis=0)
        self._cached_adj = None   # mimic GCNConv(cached=True)

    def __call__(self, x, edge_index):
        if self._cached_adj is None:
            self._cached_adj = gcn_norm_dense_adj(edge_index, x.shape[0])
        adj = self._cached_adj
        out = gae_encoder_forward(adj, x, self.w1, self.b1, self._w2c, self._b2c,
                                  compute_dtype=self.compute_dtype)
        if self.model_type == "GAE":
            return out
        d = self.out_channels
        return out[:, :d], out[:, d:2 * d]


# ---------------------------- pure-JAX reference ------------------------------
def _ref_forward(enc, x, edge_index):
    adj = gcn_norm_dense_adj(edge_index, x.shape[0])
    h = jnp.maximum(adj @ (x @ enc.w1) + enc.b1, 0.0)
    if enc.model_type == "GAE":
        return adj @ (h @ enc.w2) + enc.b2
    return (adj @ (h @ enc.w_mu) + enc.b_mu,
            adj @ (h @ enc.w_lv) + enc.b_lv)


# ------------------------------------ main ------------------------------------
if __name__ == "__main__":
    key = jax.random.PRNGKey(0)
    k_x, k_e, k_g, k_v, k_x2, k_e2, k_g2 = jax.random.split(key, 7)

    ok = True

    # ---- small single-tile case (original toy sizes) ----
    n, fin, fout, ne = 16, 8, 4, 24
    x = jax.random.normal(k_x, (n, fin), jnp.float32)
    edge_index = jax.random.randint(k_e, (2, ne), 0, n, dtype=jnp.int32)

    enc_gae = GAEEncoderPallas(fin, fout, "GAE", k_g)
    z = jax.block_until_ready(enc_gae(x, edge_index))
    z_ref = _ref_forward(enc_gae, x, edge_index)
    ok &= z.shape == (n, fout)
    ok &= bool(jnp.allclose(z, z_ref, atol=1e-4, rtol=1e-4))

    enc_vgae = GAEEncoderPallas(fin, fout, "VGAE", k_v)
    mu, logvar = jax.block_until_ready(enc_vgae(x, edge_index))
    mu_ref, logvar_ref = _ref_forward(enc_vgae, x, edge_index)
    ok &= mu.shape == (n, fout) and logvar.shape == (n, fout)
    ok &= bool(jnp.allclose(mu, mu_ref, atol=1e-4, rtol=1e-4))
    ok &= bool(jnp.allclose(logvar, logvar_ref, atol=1e-4, rtol=1e-4))

    # ---- larger multi-row-tile case (exercises the tiled two-phase grid) ----
    n2, fin2, fout2, ne2 = 384, 32, 16, 1536
    x2 = jax.random.normal(k_x2, (n2, fin2), jnp.float32)
    edge_index2 = jax.random.randint(k_e2, (2, ne2), 0, n2, dtype=jnp.int32)

    enc2 = GAEEncoderPallas(fin2, fout2, "GAE", k_g2)
    z2 = jax.block_until_ready(enc2(x2, edge_index2))
    z2_ref = _ref_forward(enc2, x2, edge_index2)
    ok &= z2.shape == (n2, fout2)
    ok &= bool(jnp.allclose(z2, z2_ref, atol=2e-3, rtol=2e-3))

    # bf16 adjacency/activations on the MXU (f32 accumulation) — looser tolerance.
    enc2_bf16 = GAEEncoderPallas(fin2, fout2, "GAE", k_g2,
                                 compute_dtype=jnp.bfloat16)
    z2_bf16 = jax.block_until_ready(enc2_bf16(x2, edge_index2))
    ok &= bool(jnp.allclose(z2_bf16, z2_ref, atol=6e-2, rtol=6e-2))

    if ok:
        print("KERNEL_OK")
    else:
        raise SystemExit("mismatch vs reference")
</pallas_src>

<mosaic_0001>
module attributes {stable_mosaic.version = 11 : i64} {
  func.func @_fused_gae_encoder_kernel(%arg0: i32, %arg1: i32, %arg2: memref<16x16xf32, #tpu.memory_space<vmem>>, %arg3: memref<16x128xf32, #tpu.memory_space<vmem>>, %arg4: memref<128x128xf32, #tpu.memory_space<vmem>>, %arg5: memref<1x128xf32, #tpu.memory_space<vmem>>, %arg6: memref<128x128xf32, #tpu.memory_space<vmem>>, %arg7: memref<1x128xf32, #tpu.memory_space<vmem>>, %arg8: memref<16x128xf32, #tpu.memory_space<vmem>>, %arg9: memref<16x128xf32, #tpu.memory_space<vmem>>, %arg10: memref<16x128xf32, #tpu.memory_space<vmem>>, %arg11: memref<16x128xf32, #tpu.memory_space<vmem>>) attributes {dimension_semantics = [#tpu.dimension_semantics<arbitrary>, #tpu.dimension_semantics<arbitrary>], iteration_bounds = array<i64: 2, 1>, scalar_prefetch = 0 : i64, scratch_operands = 3 : i64, tpu.core_type = #tpu.core_type<tc>, window_params = [{transform_indices = @transform_0, window_bounds = array<i64: 16, 16>}, {pipeline_mode = #tpu.pipeline_mode<synchronous>, transform_indices = @transform_1, window_bounds = array<i64: 16, 128>}, {pipeline_mode = #tpu.pipeline_mode<synchronous>, transform_indices = @transform_2, window_bounds = array<i64: 128, 128>}, {pipeline_mode = #tpu.pipeline_mode<synchronous>, transform_indices = @transform_3, window_bounds = array<i64: 1, 128>}, {pipeline_mode = #tpu.pipeline_mode<synchronous>, transform_indices = @transform_4, window_bounds = array<i64: 128, 128>}, {pipeline_mode = #tpu.pipeline_mode<synchronous>, transform_indices = @transform_5, window_bounds = array<i64: 1, 128>}, {transform_indices = @transform_6, window_bounds = array<i64: 16, 128>}]} {
    %c0_i32 = arith.constant 0 : i32
    %0 = arith.cmpi eq, %arg0, %c0_i32 : i32
    %c0_i32_0 = arith.constant 0 : i32
    %1 = arith.cmpi eq, %arg1, %c0_i32_0 : i32
    %2 = arith.andi %0, %1 : i1
    %3 = arith.extui %2 : i1 to i32
    %c0_i32_1 = arith.constant 0 : i32
    %4 = arith.cmpi ne, %3, %c0_i32_1 : i32
    scf.if %4 {
      %c0 = arith.constant 0 : index
      %c0_8 = arith.constant 0 : index
      %16 = vector.load %arg3[%c0, %c0_8] : memref<16x128xf32, #tpu.memory_space<vmem>>, vector<16x128xf32>
      %c0_9 = arith.constant 0 : index
      %c0_10 = arith.constant 0 : index
      %17 = vector.load %arg4[%c0_9, %c0_10] : memref<128x128xf32, #tpu.memory_space<vmem>>, vector<128x128xf32>
      %cst = arith.constant dense<0.000000e+00> : vector<16x128xf32>
      %18 = tpu.matmul %16, %17, %cst {dimension_numbers = #tpu.dot_dimension_numbers<[1], [0], [0], [1], [0, 0, 1, 1], [], []>} : vector<16x128xf32>, vector<128x128xf32>, vector<16x128xf32> -> vector<16x128xf32>
      %c0_11 = arith.constant 0 : index
      %c0_12 = arith.constant 0 : index
      %19 = vector.load %arg9[%c0_11, %c0_12] : memref<16x128xf32, #tpu.memory_space<vmem>>, vector<16x128xf32>
      tpu.vector_store %arg9[%c0_11, %c0_12], %18 {strides = array<i32>} : memref<16x128xf32, #tpu.memory_space<vmem>>, vector<16x128xf32>,
    } else {
    }
    %c0_i32_2 = arith.constant 0 : i32
    %5 = arith.cmpi eq, %arg0, %c0_i32_2 : i32
    %6 = arith.extui %5 : i1 to i32
    %c0_i32_3 = arith.constant 0 : i32
    %7 = arith.cmpi ne, %6, %c0_i32_3 : i32
    scf.if %7 {
      %c0 = arith.constant 0 : index
      %c0_8 = arith.constant 0 : index
      %16 = vector.load %arg2[%c0, %c0_8] : memref<16x16xf32, #tpu.memory_space<vmem>>, vector<16x16xf32>
      %c0_9 = arith.constant 0 : index
      %c0_10 = arith.constant 0 : index
      %17 = vector.load %arg9[%c0_9, %c0_10] : memref<16x128xf32, #tpu.memory_space<vmem>>, vector<16x128xf32>
      %cst = arith.constant dense<0.000000e+00> : vector<16x128xf32>
      %18 = tpu.matmul %16, %17, %cst {dimension_numbers = #tpu.dot_dimension_numbers<[1], [0], [0], [1], [0, 0, 1, 1], [], []>} : vector<16x16xf32>, vector<16x128xf32>, vector<16x128xf32> -> vector<16x128xf32>
      %c0_11 = arith.constant 0 : index
      %c0_12 = arith.constant 0 : index
      %19 = vector.load %arg5[%c0_11, %c0_12] : memref<1x128xf32, #tpu.memory_space<vmem>>, vector<1x128xf32>
      %20 = vector.broadcast %19 : vector<1x128xf32> to vector<16x128xf32>
      %21 = arith.addf %18, %20 : vector<16x128xf32>
      %cst_13 = arith.constant 0.000000e+00 : f32
      %22 = vector.broadcast %cst_13 : f32 to vector<16x128xf32>
      %23 = arith.maximumf %21, %22 : vector<16x128xf32>
      %c16_i32 = arith.constant 16 : i32
      %24 = arith.muli %arg1, %c16_i32 : i32
      %25 = tpu.assume_multiple %24, 16 : i32
      %26 = arith.index_cast %25 : i32 to index
      %c0_14 = arith.constant 0 : index
      %27 = vector.load %arg10[%26, %c0_14] : memref<16x128xf32, #tpu.memory_space<vmem>>, vector<16x128xf32>
      tpu.vector_store %arg10[%26, %c0_14], %23 {strides = array<i32>} : memref<16x128xf32, #tpu.memory_space<vmem>>, vector<16x128xf32>,
    } else {
    }
    %c1_i32 = arith.constant 1 : i32
    %8 = arith.cmpi eq, %arg0, %c1_i32 : i32
    %c0_i32_4 = arith.constant 0 : i32
    %9 = arith.cmpi eq, %arg1, %c0_i32_4 : i32
    %10 = arith.andi %8, %9 : i1
    %11 = arith.extui %10 : i1 to i32
    %c0_i32_5 = arith.constant 0 : i32
    %12 = arith.cmpi ne, %11, %c0_i32_5 : i32
    scf.if %12 {
      %c0 = arith.constant 0 : index
      %c0_8 = arith.constant 0 : index
      %16 = vector.load %arg10[%c0, %c0_8] : memref<16x128xf32, #tpu.memory_space<vmem>>, vector<16x128xf32>
      %c0_9 = arith.constant 0 : index
      %c0_10 = arith.constant 0 : index
      %17 = vector.load %arg6[%c0_9, %c0_10] : memref<128x128xf32, #tpu.memory_space<vmem>>, vector<128x128xf32>
      %cst = arith.constant dense<0.000000e+00> : vector<16x128xf32>
      %18 = tpu.matmul %16, %17, %cst {dimension_numbers = #tpu.dot_dimension_numbers<[1], [0], [0], [1], [0, 0, 1, 1], [], []>} : vector<16x128xf32>, vector<128x128xf32>, vector<16x128xf32> -> vector<16x128xf32>
      %c0_11 = arith.constant 0 : index
      %c0_12 = arith.constant 0 : index
      %19 = vector.load %arg11[%c0_11, %c0_12] : memref<16x128xf32, #tpu.memory_space<vmem>>, vector<16x128xf32>
      tpu.vector_store %arg11[%c0_11, %c0_12], %18 {strides = array<i32>} : memref<16x128xf32, #tpu.memory_space<vmem>>, vector<16x128xf32>,
    } else {
    }
    %c1_i32_6 = arith.constant 1 : i32
    %13 = arith.cmpi eq, %arg0, %c1_i32_6 : i32
    %14 = arith.extui %13 : i1 to i32
    %c0_i32_7 = arith.constant 0 : i32
    %15 = arith.cmpi ne, %14, %c0_i32_7 : i32
    scf.if %15 {
      %c0 = arith.constant 0 : index
      %c0_8 = arith.constant 0 : index
      %16 = vector.load %arg2[%c0, %c0_8] : memref<16x16xf32, #tpu.memory_space<vmem>>, vector<16x16xf32>
      %c0_9 = arith.constant 0 : index
      %c0_10 = arith.constant 0 : index
      %17 = vector.load %arg11[%c0_9, %c0_10] : memref<16x128xf32, #tpu.memory_space<vmem>>, vector<16x128xf32>
      %cst = arith.constant dense<0.000000e+00> : vector<16x128xf32>
      %18 = tpu.matmul %16, %17, %cst {dimension_numbers = #tpu.dot_dimension_numbers<[1], [0], [0], [1], [0, 0, 1, 1], [], []>} : vector<16x16xf32>, vector<16x128xf32>, vector<16x128xf32> -> vector<16x128xf32>
      %c0_11 = arith.constant 0 : index
      %c0_12 = arith.constant 0 : index
      %19 = vector.load %arg7[%c0_11, %c0_12] : memref<1x128xf32, #tpu.memory_space<vmem>>, vector<1x128xf32>
      %20 = vector.broadcast %19 : vector<1x128xf32> to vector<16x128xf32>
      %21 = arith.addf %18, %20 : vector<16x128xf32>
      %c0_13 = arith.constant 0 : index
      %c0_14 = arith.constant 0 : index
      %22 = vector.load %arg8[%c0_13, %c0_14] : memref<16x128xf32, #tpu.memory_space<vmem>>, vector<16x128xf32>
      tpu.vector_store %arg8[%c0_13, %c0_14], %21 {strides = array<i32>} : memref<16x128xf32, #tpu.memory_space<vmem>>, vector<16x128xf32>,
    } else {
    }
    return
  }
  func.func @transform_0(%arg0: i32, %arg1: i32) -> (i32, i32) {
    %c0_i32 = arith.constant 0 : i32
    %c0_i32_0 = arith.constant 0 : i32
    return %arg1, %c0_i32 : i32, i32
  }
  func.func @transform_1(%arg0: i32, %arg1: i32) -> (i32, i32) {
    %c0_i32 = arith.constant 0 : i32
    %c0_i32_0 = arith.constant 0 : i32
    %c0_i32_1 = arith.constant 0 : i32
    return %c0_i32, %c0_i32_0 : i32, i32
  }
  func.func @transform_2(%arg0: i32, %arg1: i32) -> (i32, i32) {
    %c0_i32 = arith.constant 0 : i32
    %c0_i32_0 = arith.constant 0 : i32
    %c0_i32_1 = arith.constant 0 : i32
    return %c0_i32, %c0_i32_0 : i32, i32
  }
  func.func @transform_3(%arg0: i32, %arg1: i32) -> (i32, i32) {
    %c0_i32 = arith.constant 0 : i32
    %c0_i32_0 = arith.constant 0 : i32
    %c0_i32_1 = arith.constant 0 : i32
    return %c0_i32, %c0_i32_0 : i32, i32
  }
  func.func @transform_4(%arg0: i32, %arg1: i32) -> (i32, i32) {
    %c0_i32 = arith.constant 0 : i32
    %c0_i32_0 = arith.constant 0 : i32
    %c0_i32_1 = arith.constant 0 : i32
    return %c0_i32, %c0_i32_0 : i32, i32
  }
  func.func @transform_5(%arg0: i32, %arg1: i32) -> (i32, i32) {
    %c0_i32 = arith.constant 0 : i32
    %c0_i32_0 = arith.constant 0 : i32
    %c0_i32_1 = arith.constant 0 : i32
    return %c0_i32, %c0_i32_0 : i32, i32
  }
  func.func @transform_6(%arg0: i32, %arg1: i32) -> (i32, i32) {
    %0 = arith.muli %arg1, %arg0 : i32
    %c0_i32 = arith.constant 0 : i32
    %c0_i32_0 = arith.constant 0 : i32
    return %0, %c0_i32 : i32, i32
  }
}

</mosaic_0001>

<llo_original>
// kernel: tpu_custom_call.1
$region0: #{tpu_custom_call.1}
  #allocation0 [shape = 'u32[]', space=smem, size = 0x4, offset = 0x4, fixed_abs, tag = 'smem constant byte address 0x4 - core index']
  #allocation1 [shape = 'u32[144,128]{1,0:T(1,128)}', space=vmem, size = 0x12000, scoped, tag = 'internal scratch']
  #allocation2 [shape = 'f32[16,128]{1,0:T(8,128)}', space=vmem, size = 0x2000, scoped, tag = 'scratch operand']
  #allocation3 [shape = 'f32[16,128]{1,0:T(8,128)}', space=vmem, size = 0x2000, scoped, tag = 'scratch operand']
  #allocation4 [shape = 'f32[16,128]{1,0:T(8,128)}', space=vmem, size = 0x2000, scoped, tag = 'scratch operand']
  %s0 = inlined_call_operand.hbm [shape: f32[16,16], index: 0, kind: input, shape index: {}]
  %s1 = inlined_call_operand.hbm [shape: f32[16,128], index: 1, kind: input, shape index: {}]
  %s2 = inlined_call_operand.hbm [shape: f32[128,128], index: 2, kind: input, shape index: {}]
  %s3 = inlined_call_operand.vmem [shape: f32[1,128], index: 3, kind: input, shape index: {}]
  %s4 = inlined_call_operand.hbm [shape: f32[128,128], index: 4, kind: input, shape index: {}]
  %s5 = inlined_call_operand.vmem [shape: f32[1,128], index: 5, kind: input, shape index: {}]
  %s6 = inlined_call_operand.hbm [shape: f32[16,128], index: 6, kind: output, shape index: {}]
  %s7 = sld [smem:[#allocation0]]
  $region89: #{tpu_custom_call.1} parent=0
    _
  %s9 = ssub.s32 1, %s7
  %s10 = scalar_select 0, %s9, %s7
  $region1: #{tpu_custom_call.1} parent=0
    #allocation5 [shape = 'u8[8192]{0}', space=vmem, size = 0x2000, scoped, tag = 'input window, operand 0, single buffered']
    #allocation6 [shape = 's32[2]{0}', space=sflag, size = 0x8, scoped, tag = 'scoped memory for tpu_custom_call.1']
    #allocation7 [shape = 's32[2]{0}', space=sflag, size = 0x8, scoped, tag = 'scoped memory for tpu_custom_call.1']
    #allocation8 [shape = 'u8[8192]{0}', space=vmem, size = 0x2000, scoped, tag = 'input window, operand 1, single buffered']
    #allocation9 [shape = 's32[1]{0}', space=sflag, size = 0x4, scoped, tag = 'scoped memory for tpu_custom_call.1']
    #allocation10 [shape = 'u8[65536]{0}', space=vmem, size = 0x10000, scoped, tag = 'input window, operand 2, single buffered']
    #allocation11 [shape = 'u8[65536]{0}', space=vmem, size = 0x10000, scoped, tag = 'input window, operand 4, single buffered']
    #allocation12 [shape = 's32[1]{0}', space=sflag, size = 0x4, scoped, tag = 'scoped memory for tpu_custom_call.1']
    #allocation13 [shape = 'u8[16384]{0}', space=vmem, size = 0x4000, scoped, tag = 'output window, operand 0']
    %11 = vsyncpa [#allocation6], 0
    %12 = vsyncpa [#allocation9], 0
    %13 = vsyncpa [#allocation12], 0
    %14 = vsyncpa [#allocation7], 0
    %s15 = scalar_lea.sflag [#allocation7], 1
    %16 = vsyncpa %s15, 0
    loop: start=0, step=1, limit=4
    $region2: #{tpu_custom_call.1} parent=1 // loop_pre_header
      _
    $region3: #{tpu_custom_call.1} parent=1 // loop_header
      %s18 = sphi 0, %s22
      %p19 = scmp.ge.s32.totalorder %s18, 4
      %s25 = sphi 0, %s37
      %s26 = sphi 0, %s33
      %s27 = sphi 0, %s25
      %s28 = sphi 0, %s26
      %s29 = sphi 0, %s27
      %s30 = sphi 0, %s28
      %s40 = sphi 0, %s42
      %s43 = sphi 0, %s40
      %s44 = sphi 0, %s43
      %s60 = sphi 0, %s44
      %s64 = sphi 0, %s64
      %s66 = sphi 0, %s64
      %s67 = sphi 0, %s66
      %s81 = sphi 0, %s67
      %s85 = sphi 0, %s85
      %s87 = sphi 0, %s85
      %s88 = sphi 0, %s87
      %s102 = sphi 0, %s88
      %s106 = sphi 0, %s106
      %s108 = sphi 0, %s106
      %s109 = sphi 0, %s108
      %s123 = sphi 0, %s109
      %s127 = sphi 0, %s127
      %s129 = sphi 0, %s127
      %s130 = sphi 0, %s129
      %s144 = sphi 0, %s130
      %s148 = sphi 0, %s148
      %s150 = sphi 0, %s148
      %s151 = sphi 0, %s150
      %s165 = sphi 0, %s151
      %s173 = sphi 0, %s175
      %s176 = sphi 0, %s173
      %s177 = sphi 0, %s176
      %s193 = sphi 0, %s177
    $region4: #{tpu_custom_call.1} parent=1 // loop_header_branch
      %21 = sbr.rel (%p19) target = $region8
    $region5: #{tpu_custom_call.1} parent=1 // loop_body
      %s23 = ssub.s32 %s18, 1
      %s24 = ssub.s32 %s18, 2
      %s31 = sadd.s32 1, %s26
      %p32 = scmp.ge.s32.totalorder %s31, 1
      %s33 = scalar_select %p32, 0, %s31
      %s34 = sadd.s32 1, %s25
      %s35 = scalar_select %p32, %s34, %s25
      %p36 = scmp.ge.s32.totalorder %s35, 2
      %s37 = scalar_select %p36, 0, %s35
      %s38 = ssub.s32 %s26, %s33
      %p39 = scmp.eq.s32.totalorder %s38, 0
      %s41 = sadd.s32 %s40, 1
      %s42 = scalar_select %p39, %s40, %s41
      %p45 = pneg %p39
      %p46 = scmp.eq.s32.totalorder %s18, 1
      %p47 = por %p45, %p46
      %p48 = scmp.ne.s32.totalorder %s40, %s43
      %p49 = scmp.eq.s32.totalorder %s18, 0
      %p50 = por %p48, %p49
      %p51 = scmp.ne.s32.totalorder %s40, %s43
      %p52 = scmp.eq.s32.totalorder %s23, 1
      %p53 = por %p51, %p52
      %p54 = scmp.ne.s32.totalorder %s43, %s44
      %p55 = scmp.eq.s32.totalorder %s23, 0
      %p56 = por %p54, %p55
      %p57 = scmp.ne.s32.totalorder %s43, %s44
      %p58 = scmp.eq.s32.totalorder %s24, 1
      %p59 = por %p57, %p58
      %p61 = scmp.ne.s32.totalorder %s44, %s60
      %p62 = scmp.eq.s32.totalorder %s24, 0
      %p63 = por %p61, %p62
      %s65 = sadd.s32 %s64, 1
      %p68 = scmp.eq.s32.totalorder %s18, 1
      %p69 = scmp.ne.s32.totalorder %s64, %s66
      %p70 = scmp.eq.s32.totalorder %s18, 0
      %p71 = por %p69, %p70
      %p72 = scmp.ne.s32.totalorder %s64, %s66
      %p73 = scmp.eq.s32.totalorder %s23, 1
      %p74 = por %p72, %p73
      %p75 = scmp.ne.s32.totalorder %s66, %s67
      %p76 = scmp.eq.s32.totalorder %s23, 0
      %p77 = por %p75, %p76
      %p78 = scmp.ne.s32.totalorder %s66, %s67
      %p79 = scmp.eq.s32.totalorder %s24, 1
      %p80 = por %p78, %p79
      %p82 = scmp.ne.s32.totalorder %s67, %s81
      %p83 = scmp.eq.s32.totalorder %s24, 0
      %p84 = por %p82, %p83
      %s86 = sadd.s32 %s85, 1
      %p89 = scmp.eq.s32.totalorder %s18, 1
      %p90 = scmp.ne.s32.totalorder %s85, %s87
      %p91 = scmp.eq.s32.totalorder %s18, 0
      %p92 = por %p90, %p91
      %p93 = scmp.ne.s32.totalorder %s85, %s87
      %p94 = scmp.eq.s32.totalorder %s23, 1
      %p95 = por %p93, %p94
      %p96 = scmp.ne.s32.totalorder %s87, %s88
      %p97 = scmp.eq.s32.totalorder %s23, 0
      %p98 = por %p96, %p97
      %p99 = scmp.ne.s32.totalorder %s87, %s88
      %p100 = scmp.eq.s32.totalorder %s24, 1
      %p101 = por %p99, %p100
      %p103 = scmp.ne.s32.totalorder %s88, %s102
      %p104 = scmp.eq.s32.totalorder %s24, 0
      %p105 = por %p103, %p104
      %s107 = sadd.s32 %s106, 1
      %p110 = scmp.eq.s32.totalorder %s18, 1
      %p111 = scmp.ne.s32.totalorder %s106, %s108
      %p112 = scmp.eq.s32.totalorder %s18, 0
      %p113 = por %p111, %p112
      %p114 = scmp.ne.s32.totalorder %s106, %s108
      %p115 = scmp.eq.s32.totalorder %s23, 1
      %p116 = por %p114, %p115
      %p117 = scmp.ne.s32.totalorder %s108, %s109
      %p118 = scmp.eq.s32.totalorder %s23, 0
      %p119 = por %p117, %p118
      %p120 = scmp.ne.s32.totalorder %s108, %s109
      %p121 = scmp.eq.s32.totalorder %s24, 1
      %p122 = por %p120, %p121
      %p124 = scmp.ne.s32.totalorder %s109, %s123
      %p125 = scmp.eq.s32.totalorder %s24, 0
      %p126 = por %p124, %p125
      %s128 = sadd.s32 %s127, 1
      %p131 = scmp.eq.s32.totalorder %s18, 1
      %p132 = scmp.ne.s32.totalorder %s127, %s129
      %p133 = scmp.eq.s32.totalorder %s18, 0
      %p134 = por %p132, %p133
      %p135 = scmp.ne.s32.totalorder %s127, %s129
      %p136 = scmp.eq.s32.totalorder %s23, 1
      %p137 = por %p135, %p136
      %p138 = scmp.ne.s32.totalorder %s129, %s130
      %p139 = scmp.eq.s32.totalorder %s23, 0
      %p140 = por %p138, %p139
      %p141 = scmp.ne.s32.totalorder %s129, %s130
      %p142 = scmp.eq.s32.totalorder %s24, 1
      %p143 = por %p141, %p142
      %p145 = scmp.ne.s32.totalorder %s130, %s144
      %p146 = scmp.eq.s32.totalorder %s24, 0
      %p147 = por %p145, %p146
      %s149 = sadd.s32 %s148, 1
      %p152 = scmp.eq.s32.totalorder %s18, 1
      %p153 = scmp.ne.s32.totalorder %s148, %s150
      %p154 = scmp.eq.s32.totalorder %s18, 0
      %p155 = por %p153, %p154
      %p156 = scmp.ne.s32.totalorder %s148, %s150
      %p157 = scmp.eq.s32.totalorder %s23, 1
      %p158 = por %p156, %p157
      %p159 = scmp.ne.s32.totalorder %s150, %s151
      %p160 = scmp.eq.s32.totalorder %s23, 0
      %p161 = por %p159, %p160
      %p162 = scmp.ne.s32.totalorder %s150, %s151
      %p163 = scmp.eq.s32.totalorder %s24, 1
      %p164 = por %p162, %p163
      %p166 = scmp.ne.s32.totalorder %s151, %s165
      %p167 = scmp.eq.s32.totalorder %s24, 0
      %p168 = por %p166, %p167
      %s169 = smul.u32 %s26, %s25
      %s170 = smul.u32 %s33, %s37
      %s171 = ssub.s32 %s169, %s170
      %p172 = scmp.eq.s32.totalorder %s171, 0
      %s174 = sadd.s32 %s173, 1
      %s175 = scalar_select %p172, %s173, %s174
      %p178 = pneg %p172
      %p179 = scmp.eq.s32.totalorder %s18, 1
      %p180 = por %p178, %p179
      %p181 = scmp.ne.s32.totalorder %s173, %s176
      %p182 = scmp.eq.s32.totalorder %s18, 0
      %p183 = por %p181, %p182
      %p184 = scmp.ne.s32.totalorder %s173, %s176
      %p185 = scmp.eq.s32.totalorder %s23, 1
      %p186 = por %p184, %p185
      %p187 = scmp.ne.s32.totalorder %s176, %s177
      %p188 = scmp.eq.s32.totalorder %s23, 0
      %p189 = por %p187, %p188
      %p190 = scmp.ne.s32.totalorder %s176, %s177
      %p191 = scmp.eq.s32.totalorder %s24, 1
      %p192 = por %p190, %p191
      %p194 = scmp.ne.s32.totalorder %s177, %s193
      %p195 = scmp.eq.s32.totalorder %s24, 0
      %p196 = por %p194, %p195
      %p197 = scmp.le.s32.totalorder 1, %s18
      %p198 = scmp.lt.s32.totalorder %s18, 3
      %p199 = pnand %p197, %p198
      %p200 = pneg %p199
      // Predicated region
      $region9: #{tpu_custom_call.1} parent=5 // pred_check
        _
      $region10: #{tpu_custom_call.1} parent=5 // pred_check_branch
        %202 = sbr.rel (%p199) target = $region12
      $region11: #{tpu_custom_call.1} parent=5 // pred_region
        %s203 = ssub.s32 %s18, 1
        // Predicated region
        $region13: #{tpu_custom_call.1} parent=11 // pred_check
          %p204 = pneg %p56
        $region14: #{tpu_custom_call.1} parent=11 // pred_check_branch
          %206 = sbr.rel (%p204) target = $region16
        $region15: #{tpu_custom_call.1} parent=11 // pred_region
          %s207 = smul.u32 2, %s28
          %s209 = ssub.s32 256, 256
          %210 = vsyncadd [#allocation6], %s209
          %s211 = smul.addr %s207, 128
          %s212 = scalar_lea.hbm %s0, %s211
          %s213 = sshll.u32 [#allocation5], 4
          %s214 = int_to_ptr.vmem [resolvable:$true] %s213
          %219 = dma.hbm_to_vmem [thread:$0]  %s212, 256, %s214, [#allocation6], 128, 128, 8
        $region16: #{tpu_custom_call.1} parent=11 // pred_fallthru
          _
        // Predicated region
        $region17: #{tpu_custom_call.1} parent=11 // pred_check
          %p220 = pneg %p77
        $region18: #{tpu_custom_call.1} parent=11 // pred_check_branch
          %222 = sbr.rel (%p220) target = $region20
        $region19: #{tpu_custom_call.1} parent=11 // pred_region
          %s224 = ssub.s32 256, 256
          %225 = vsyncadd [#allocation9], %s224
          %s226 = sshll.u32 [#allocation8], 4
          %s227 = int_to_ptr.vmem [resolvable:$true] %s226
          %232 = dma.hbm_to_vmem [thread:$0]  %s1, 256, %s227, [#allocation9], 128, 128, 8
        $region20: #{tpu_custom_call.1} parent=11 // pred_fallthru
          _
        // Predicated region
        $region21: #{tpu_custom_call.1} parent=11 // pred_check
          %p233 = pneg %p98
        $region22: #{tpu_custom_call.1} parent=11 // pred_check_branch
          %235 = sbr.rel (%p233) target = $region24
        $region23: #{tpu_custom_call.1} parent=11 // pred_region
          %s237 = ssub.s32 2048, 2048
          %238 = vsyncadd [#allocation9], %s237
          %s239 = sshll.u32 [#allocation10], 4
          %s240 = int_to_ptr.vmem [resolvable:$true] %s239
          %245 = dma.hbm_to_vmem [thread:$0]  %s2, 2048, %s240, [#allocation9], 128, 128, 8
        $region24: #{tpu_custom_call.1} parent=11 // pred_fallthru
          _
        // Predicated region
        $region25: #{tpu_custom_call.1} parent=11 // pred_check
          %p246 = pneg %p119
        $region26: #{tpu_custom_call.1} parent=11 // pred_check_branch
          %248 = sbr.rel (%p246) target = $region28
        $region27: #{tpu_custom_call.1} parent=11 // pred_region
          _
        $region28: #{tpu_custom_call.1} parent=11 // pred_fallthru
          _
        // Predicated region
        $region29: #{tpu_custom_call.1} parent=11 // pred_check
          %p249 = pneg %p140
        $region30: #{tpu_custom_call.1} parent=11 // pred_check_branch
          %251 = sbr.rel (%p249) target = $region32
        $region31: #{tpu_custom_call.1} parent=11 // pred_region
          %s253 = ssub.s32 2048, 2048
          %254 = vsyncadd [#allocation12], %s253
          %s255 = sshll.u32 [#allocation11], 4
          %s256 = int_to_ptr.vmem [resolvable:$true] %s255
          %261 = dma.hbm_to_vmem [thread:$0]  %s4, 2048, %s256, [#allocation12], 128, 128, 8
        $region32: #{tpu_custom_call.1} parent=11 // pred_fallthru
          _
        // Predicated region
        $region33: #{tpu_custom_call.1} parent=11 // pred_check
          %p262 = pneg %p161
        $region34: #{tpu_custom_call.1} parent=11 // pred_check_branch
          %264 = sbr.rel (%p262) target = $region36
        $region35: #{tpu_custom_call.1} parent=11 // pred_region
          _
        $region36: #{tpu_custom_call.1} parent=11 // pred_fallthru
          _
      $region12: #{tpu_custom_call.1} parent=5 // pred_fallthru
        _
      %p265 = scmp.lt.s32.totalorder %s18, 2
      // Predicated region
      $region37: #{tpu_custom_call.1} parent=5 // pred_check
        %p266 = pneg %p265
      $region38: #{tpu_custom_call.1} parent=5 // pred_check_branch
        %268 = sbr.rel (%p266) target = $region40
      $region39: #{tpu_custom_call.1} parent=5 // pred_region
        _
      $region40: #{tpu_custom_call.1} parent=5 // pred_fallthru
        _
      %p269 = scmp.le.s32.totalorder 1, %s18
      %p270 = scmp.lt.s32.totalorder %s18, 3
      %p271 = pnand %p269, %p270
      %p272 = pneg %p271
      // Predicated region
      $region41: #{tpu_custom_call.1} parent=5 // pred_check
        _
      $region42: #{tpu_custom_call.1} parent=5 // pred_check_branch
        %274 = sbr.rel (%p271) target = $region44
      $region43: #{tpu_custom_call.1} parent=5 // pred_region
        %s275 = ssub.s32 %s18, 1
        // Predicated region
        $region45: #{tpu_custom_call.1} parent=43 // pred_check
          %p276 = pneg %p56
        $region46: #{tpu_custom_call.1} parent=43 // pred_check_branch
          %278 = sbr.rel (%p276) target = $region48
        $region47: #{tpu_custom_call.1} parent=43 // pred_region
          %279 = dma.done [#allocation6], 256
        $region48: #{tpu_custom_call.1} parent=43 // pred_fallthru
          _
        // Predicated region
        $region49: #{tpu_custom_call.1} parent=43 // pred_check
          %p280 = pneg %p77
        $region50: #{tpu_custom_call.1} parent=43 // pred_check_branch
          %282 = sbr.rel (%p280) target = $region52
        $region51: #{tpu_custom_call.1} parent=43 // pred_region
          %283 = dma.done [#allocation9], 256
        $region52: #{tpu_custom_call.1} parent=43 // pred_fallthru
          _
        // Predicated region
        $region53: #{tpu_custom_call.1} parent=43 // pred_check
          %p284 = pneg %p98
        $region54: #{tpu_custom_call.1} parent=43 // pred_check_branch
          %286 = sbr.rel (%p284) target = $region56
        $region55: #{tpu_custom_call.1} parent=43 // pred_region
          %287 = dma.done [#allocation9], 2048
        $region56: #{tpu_custom_call.1} parent=43 // pred_fallthru
          _
        // Predicated region
        $region57: #{tpu_custom_call.1} parent=43 // pred_check
          %p288 = pneg %p140
        $region58: #{tpu_custom_call.1} parent=43 // pred_check_branch
          %290 = sbr.rel (%p288) target = $region60
        $region59: #{tpu_custom_call.1} parent=43 // pred_region
          %291 = dma.done [#allocation12], 2048
        $region60: #{tpu_custom_call.1} parent=43 // pred_fallthru
          _
        %p292 = pneg %p56
        %p293 = pneg %p53
        %p294 = pneg %p77
        %p295 = pneg %p74
        %p296 = pneg %p98
        %p297 = pneg %p95
        %p298 = pneg %p119
        %p299 = pneg %p116
        %p300 = pneg %p140
        %p301 = pneg %p137
        %p302 = pneg %p161
        %p303 = pneg %p158
        %p304 = pneg %p189
        %p305 = pneg %p186
        %s306 = sand.u32 %s176, 1
        %s307 = scalar_lea.sflag [#allocation7], %s306
        %s308 = sand.u32 %s176, 1
        %s309 = smul.addr %s308, 16
        %s310 = scalar_lea.vmem [#allocation13], %s309
        %s311 = smul.u32 2, %s28
        %s312 = smul.u32 %s28, %s27
        %s313 = smul.u32 2, %s312
        %p314 = scmp.eq.s32.totalorder %s27, 0
        %p315 = scmp.eq.s32.totalorder %s28, 0
        %p316 = pnand %p314, %p315
        %p317 = pneg %p316
        // Predicated region
        $region61: #{tpu_custom_call.1} parent=43 // pred_check
          _
        $region62: #{tpu_custom_call.1} parent=43 // pred_check_branch
          %319 = sbr.rel (%p316) target = $region64
        $region63: #{tpu_custom_call.1} parent=43 // pred_region
          %v320 = vld [vmem:[#allocation8] sm:$0xff]
          %v321 = vld [vmem:[#allocation8 + $0x8] sm:$0xff]
          %v322 = vld [vmem:[#allocation10] sm:$0xff]
          %v323 = vld [vmem:[#allocation10 + $0x8] sm:$0xff]
          %v324 = vld [vmem:[#allocation10 + $0x10] sm:$0xff]
          %v325 = vld [vmem:[#allocation10 + $0x18] sm:$0xff]
          %v326 = vld [vmem:[#allocation10 + $0x20] sm:$0xff]
          %v327 = vld [vmem:[#allocation10 + $0x28] sm:$0xff]
          %v328 = vld [vmem:[#allocation10 + $0x30] sm:$0xff]
          %v329 = vld [vmem:[#allocation10 + $0x38] sm:$0xff]
          %v330 = vld [vmem:[#allocation10 + $0x40] sm:$0xff]
          %v331 = vld [vmem:[#allocation10 + $0x48] sm:$0xff]
          %v332 = vld [vmem:[#allocation10 + $0x50] sm:$0xff]
          %v333 = vld [vmem:[#allocation10 + $0x58] sm:$0xff]
          %v334 = vld [vmem:[#allocation10 + $0x60] sm:$0xff]
          %v335 = vld [vmem:[#allocation10 + $0x68] sm:$0xff]
          %v336 = vld [vmem:[#allocation10 + $0x70] sm:$0xff]
          %v337 = vld [vmem:[#allocation10 + $0x78] sm:$0xff]
          %338 = vmatprep.subr.mxu0 0.0
          %339 = vmatpush1.msra.mxu0 %v322
          %340 = vmatprep.subr.mxu0 0.0
          %341 = vmatpush1.msra.mxu0 %v323
          %342 = vmatprep.subr.mxu0 0.0
          %343 = vmatpush1.msra.mxu0 %v324
          %344 = vmatprep.subr.mxu0 0.0
          %345 = vmatpush1.msra.mxu0 %v325
          %346 = vmatprep.subr.mxu0 0.0
          %347 = vmatpush1.msra.mxu0 %v326
          %348 = vmatprep.subr.mxu0 0.0
          %349 = vmatpush1.msra.mxu0 %v327
          %350 = vmatprep.subr.mxu0 0.0
          %351 = vmatpush1.msra.mxu0 %v328
          %352 = vmatprep.subr.mxu0 0.0
          %353 = vmatpush1.msra.mxu0 %v329
          %354 = vmatprep.subr.mxu0 0.0
          %355 = vmatpush1.msra.mxu0 %v330
          %356 = vmatprep.subr.mxu0 0.0
          %357 = vmatpush1.msra.mxu0 %v331
          %358 = vmatprep.subr.mxu0 0.0
          %359 = vmatpush1.msra.mxu0 %v332
          %360 = vmatprep.subr.mxu0 0.0
          %361 = vmatpush1.msra.mxu0 %v333
          %362 = vmatprep.subr.mxu0 0.0
          %363 = vmatpush1.msra.mxu0 %v334
          %364 = vmatprep.subr.mxu0 0.0
          %365 = vmatpush1.msra.mxu0 %v335
          %366 = vmatprep.subr.mxu0 0.0
          %367 = vmatpush1.msra.mxu0 %v336
          %368 = vmatprep.subr.mxu0 0.0
          %369 = vmatpush1.msra.mxu0 %v337
          %370 = vmatprep.subr.mxu0 0.0
          %371 = vmatpush1.msra.mxu0 0.0
          %372 = vmatprep.subr.mxu0 0.0
          %373 = vmatpush1.msra.mxu0 0.0
          %374 = vmatprep.subr.mxu0 0.0
          %375 = vmatpush1.msra.mxu0 0.0
          %376 = vmatprep.subr.mxu0 0.0
          %377 = vmatpush1.msra.mxu0 0.0
          %378 = vmatprep.subr.mxu0 0.0
          %379 = vmatpush1.msra.mxu0 0.0
          %380 = vmatprep.subr.mxu0 0.0
          %381 = vmatpush1.msra.mxu0 0.0
          %382 = vmatprep.subr.mxu0 0.0
          %383 = vmatpush1.msra.mxu0 0.0
          %384 = vmatprep.subr.mxu0 0.0
          %385 = vmatpush1.msra.mxu0 0.0
          %386 = vmatprep.subr.mxu0 0.0
          %387 = vmatpush1.msra.mxu0 0.0
          %388 = vmatprep.subr.mxu0 0.0
          %389 = vmatpush1.msra.mxu0 0.0
          %390 = vmatprep.subr.mxu0 0.0
          %391 = vmatpush1.msra.mxu0 0.0
          %392 = vmatprep.subr.mxu0 0.0
          %393 = vmatpush1.msra.mxu0 0.0
          %394 = vmatprep.subr.mxu0 0.0
          %395 = vmatpush1.msra.mxu0 0.0
          %396 = vmatprep.subr.mxu0 0.0
          %397 = vmatpush1.msra.mxu0 0.0
          %398 = vmatprep.subr.mxu0 0.0
          %399 = vmatpush1.msra.mxu0 0.0
          %400 = vmatprep.subr.mxu0 0.0
          %401 = vmatpush1.msra.mxu0 0.0
          %402 = vmatprep.mubr.f32.mxu0 0.0
          %403 = vmatmul.mubr.f32.gmra.mrb[0].mxu0 %v320
          %v404 = vpop.f32.mrb[0].mxu0
          %v405 = vadd.f32 0.0, %v404
          %v406 = vpop.f32.mrb[0].mxu0
          %407 = vmatprep.mubr.f32.mxu0 0.0
          %408 = vmatmul.mubr.f32.gmra.mrb[0].mxu0 %v321
          %v409 = vpop.f32.mrb[0].mxu0
          %v410 = vadd.f32 0.0, %v409
          %v411 = vpop.f32.mrb[0].mxu0
          %412 = vdwg.mxu0
          %413 = vst [vmem:[#allocation2] sm:$0xff] %v405
          %414 = vst [vmem:[#allocation2 + $0x8] sm:$0xff] %v410
        $region64: #{tpu_custom_call.1} parent=43 // pred_fallthru
          _
        // Predicated region
        $region65: #{tpu_custom_call.1} parent=43 // pred_check
          %p415 = pneg %p314
        $region66: #{tpu_custom_call.1} parent=43 // pred_check_branch
          %417 = sbr.rel (%p415) target = $region68
        $region67: #{tpu_custom_call.1} parent=43 // pred_region
          %v418 = vld [vmem:[#allocation5] sm:$0xff]
          %v419 = vld [vmem:[#allocation5 + $0x8] sm:$0xff]
          %v420 = vld [vmem:[#allocation2] sm:$0xff]
          %v421 = vld [vmem:[#allocation2 + $0x8] sm:$0xff]
          %v422 = vld [vmem:[%s3] sm:$0x1]
          %v424 = vlaneseq
          %v425 = vshrl.u32 %v424, 7
          %v426 = vsub.s32 0, %v425
          %v427 = vrot.slane %v422, %v426
          %vm429 = vcmask 130048
          %v431 = vsel %vm429, %v418, 0
          %v434 = vsel %vm429, %v419, 0
          %436 = vmatprep.subr.mxu0 0.0
          %437 = vmatpush1.msra.mxu0 %v420
          %438 = vmatprep.subr.mxu0 0.0
          %439 = vmatpush1.msra.mxu0 %v421
          %440 = vmatprep.subr.mxu0 0.0
          %441 = vmatpush1.msra.mxu0 0.0
          %442 = vmatprep.subr.mxu0 0.0
          %443 = vmatpush1.msra.mxu0 0.0
          %444 = vmatprep.subr.mxu0 0.0
          %445 = vmatpush1.msra.mxu0 0.0
          %446 = vmatprep.subr.mxu0 0.0
          %447 = vmatpush1.msra.mxu0 0.0
          %448 = vmatprep.subr.mxu0 0.0
          %449 = vmatpush1.msra.mxu0 0.0
          %450 = vmatprep.subr.mxu0 0.0
          %451 = vmatpush1.msra.mxu0 0.0
          %452 = vmatprep.subr.mxu0 0.0
          %453 = vmatpush1.msra.mxu0 0.0
          %454 = vmatprep.subr.mxu0 0.0
          %455 = vmatpush1.msra.mxu0 0.0
          %456 = vmatprep.subr.mxu0 0.0
          %457 = vmatpush1.msra.mxu0 0.0
          %458 = vmatprep.subr.mxu0 0.0
          %459 = vmatpush1.msra.mxu0 0.0
          %460 = vmatprep.subr.mxu0 0.0
          %461 = vmatpush1.msra.mxu0 0.0
          %462 = vmatprep.subr.mxu0 0.0
          %463 = vmatpush1.msra.mxu0 0.0
          %464 = vmatprep.subr.mxu0 0.0
          %465 = vmatpush1.msra.mxu0 0.0
          %466 = vmatprep.subr.mxu0 0.0
          %467 = vmatpush1.msra.mxu0 0.0
          %468 = vmatprep.subr.mxu0 0.0
          %469 = vmatpush1.msra.mxu0 0.0
          %470 = vmatprep.subr.mxu0 0.0
          %471 = vmatpush1.msra.mxu0 0.0
          %472 = vmatprep.subr.mxu0 0.0
          %473 = vmatpush1.msra.mxu0 0.0
          %474 = vmatprep.subr.mxu0 0.0
          %475 = vmatpush1.msra.mxu0 0.0
          %476 = vmatprep.subr.mxu0 0.0
          %477 = vmatpush1.msra.mxu0 0.0
          %478 = vmatprep.subr.mxu0 0.0
          %479 = vmatpush1.msra.mxu0 0.0
          %480 = vmatprep.subr.mxu0 0.0
          %481 = vmatpush1.msra.mxu0 0.0
          %482 = vmatprep.subr.mxu0 0.0
          %483 = vmatpush1.msra.mxu0 0.0
          %484 = vmatprep.subr.mxu0 0.0
          %485 = vmatpush1.msra.mxu0 0.0
          %486 = vmatprep.subr.mxu0 0.0
          %487 = vmatpush1.msra.mxu0 0.0
          %488 = vmatprep.subr.mxu0 0.0
          %489 = vmatpush1.msra.mxu0 0.0
          %490 = vmatprep.subr.mxu0 0.0
          %491 = vmatpush1.msra.mxu0 0.0
          %492 = vmatprep.subr.mxu0 0.0
          %493 = vmatpush1.msra.mxu0 0.0
          %494 = vmatprep.subr.mxu0 0.0
          %495 = vmatpush1.msra.mxu0 0.0
          %496 = vmatprep.subr.mxu0 0.0
          %497 = vmatpush1.msra.mxu0 0.0
          %498 = vmatprep.subr.mxu0 0.0
          %499 = vmatpush1.msra.mxu0 0.0
          %500 = vmatprep.mubr.f32.mxu0 0.0
          %501 = vmatmul.mubr.f32.gmra.mrb[0].mxu0 %v431
          %v502 = vpop.f32.mrb[0].mxu0
          %v503 = vadd.f32 %v427, %v502
          %v504 = vpop.f32.mrb[0].mxu0
          %505 = vmatprep.mubr.f32.mxu0 0.0
          %506 = vmatmul.mubr.f32.gmra.mrb[0].mxu0 %v434
          %v507 = vpop.f32.mrb[0].mxu0
          %v508 = vadd.f32 %v427, %v507
          %v509 = vpop.f32.mrb[0].mxu0
          %510 = vdwg.mxu0
          %v511 = vmax.f32 %v503, 0.0
          %v512 = vmax.f32 %v508, 0.0
          %s513 = smul.u32 %s28, 16
          %s514 = scalar_lea.vmem [#allocation3], %s513
          %515 = vst [vmem:[%s514] sm:$0xff] %v511
          %516 = vst [vmem:[%s514 + $0x8] sm:$0xff] %v512
        $region68: #{tpu_custom_call.1} parent=43 // pred_fallthru
          _
        %p517 = scmp.eq.s32.totalorder %s27, 1
        %p518 = pnand %p517, %p315
        %p519 = pneg %p518
        // Predicated region
        $region69: #{tpu_custom_call.1} parent=43 // pred_check
          _
        $region70: #{tpu_custom_call.1} parent=43 // pred_check_branch
          %521 = sbr.rel (%p518) target = $region72
        $region71: #{tpu_custom_call.1} parent=43 // pred_region
          %v522 = vld [vmem:[#allocation3] sm:$0xff]
          %v523 = vld [vmem:[#allocation3 + $0x8] sm:$0xff]
          %v524 = vld [vmem:[#allocation11] sm:$0xff]
          %v525 = vld [vmem:[#allocation11 + $0x8] sm:$0xff]
          %v526 = vld [vmem:[#allocation11 + $0x10] sm:$0xff]
          %v527 = vld [vmem:[#allocation11 + $0x18] sm:$0xff]
          %v528 = vld [vmem:[#allocation11 + $0x20] sm:$0xff]
          %v529 = vld [vmem:[#allocation11 + $0x28] sm:$0xff]
          %v530 = vld [vmem:[#allocation11 + $0x30] sm:$0xff]
          %v531 = vld [vmem:[#allocation11 + $0x38] sm:$0xff]
          %v532 = vld [vmem:[#allocation11 + $0x40] sm:$0xff]
          %v533 = vld [vmem:[#allocation11 + $0x48] sm:$0xff]
          %v534 = vld [vmem:[#allocation11 + $0x50] sm:$0xff]
          %v535 = vld [vmem:[#allocation11 + $0x58] sm:$0xff]
          %v536 = vld [vmem:[#allocation11 + $0x60] sm:$0xff]
          %v537 = vld [vmem:[#allocation11 + $0x68] sm:$0xff]
          %v538 = vld [vmem:[#allocation11 + $0x70] sm:$0xff]
          %v539 = vld [vmem:[#allocation11 + $0x78] sm:$0xff]
          %540 = vmatprep.subr.mxu0 0.0
          %541 = vmatpush1.msra.mxu0 %v524
          %542 = vmatprep.subr.mxu0 0.0
          %543 = vmatpush1.msra.mxu0 %v525
          %544 = vmatprep.subr.mxu0 0.0
          %545 = vmatpush1.msra.mxu0 %v526
          %546 = vmatprep.subr.mxu0 0.0
          %547 = vmatpush1.msra.mxu0 %v527
          %548 = vmatprep.subr.mxu0 0.0
          %549 = vmatpush1.msra.mxu0 %v528
          %550 = vmatprep.subr.mxu0 0.0
          %551 = vmatpush1.msra.mxu0 %v529
          %552 = vmatprep.subr.mxu0 0.0
          %553 = vmatpush1.msra.mxu0 %v530
          %554 = vmatprep.subr.mxu0 0.0
          %555 = vmatpush1.msra.mxu0 %v531
          %556 = vmatprep.subr.mxu0 0.0
          %557 = vmatpush1.msra.mxu0 %v532
          %558 = vmatprep.subr.mxu0 0.0
          %559 = vmatpush1.msra.mxu0 %v533
          %560 = vmatprep.subr.mxu0 0.0
          %561 = vmatpush1.msra.mxu0 %v534
          %562 = vmatprep.subr.mxu0 0.0
          %563 = vmatpush1.msra.mxu0 %v535
          %564 = vmatprep.subr.mxu0 0.0
          %565 = vmatpush1.msra.mxu0 %v536
          %566 = vmatprep.subr.mxu0 0.0
          %567 = vmatpush1.msra.mxu0 %v537
          %568 = vmatprep.subr.mxu0 0.0
          %569 = vmatpush1.msra.mxu0 %v538
          %570 = vmatprep.subr.mxu0 0.0
          %571 = vmatpush1.msra.mxu0 %v539
          %572 = vmatprep.subr.mxu0 0.0
          %573 = vmatpush1.msra.mxu0 0.0
          %574 = vmatprep.subr.mxu0 0.0
          %575 = vmatpush1.msra.mxu0 0.0
          %576 = vmatprep.subr.mxu0 0.0
          %577 = vmatpush1.msra.mxu0 0.0
          %578 = vmatprep.subr.mxu0 0.0
          %579 = vmatpush1.msra.mxu0 0.0
          %580 = vmatprep.subr.mxu0 0.0
          %581 = vmatpush1.msra.mxu0 0.0
          %582 = vmatprep.subr.mxu0 0.0
          %583 = vmatpush1.msra.mxu0 0.0
          %584 = vmatprep.subr.mxu0 0.0
          %585 = vmatpush1.msra.mxu0 0.0
          %586 = vmatprep.subr.mxu0 0.0
          %587 = vmatpush1.msra.mxu0 0.0
          %588 = vmatprep.subr.mxu0 0.0
          %589 = vmatpush1.msra.mxu0 0.0
          %590 = vmatprep.subr.mxu0 0.0
          %591 = vmatpush1.msra.mxu0 0.0
          %592 = vmatprep.subr.mxu0 0.0
          %593 = vmatpush1.msra.mxu0 0.0
          %594 = vmatprep.subr.mxu0 0.0
          %595 = vmatpush1.msra.mxu0 0.0
          %596 = vmatprep.subr.mxu0 0.0
          %597 = vmatpush1.msra.mxu0 0.0
          %598 = vmatprep.subr.mxu0 0.0
          %599 = vmatpush1.msra.mxu0 0.0
          %600 = vmatprep.subr.mxu0 0.0
          %601 = vmatpush1.msra.mxu0 0.0
          %602 = vmatprep.subr.mxu0 0.0
          %603 = vmatpush1.msra.mxu0 0.0
          %604 = vmatprep.mubr.f32.mxu0 0.0
          %605 = vmatmul.mubr.f32.gmra.mrb[0].mxu0 %v522
          %v606 = vpop.f32.mrb[0].mxu0
          %v607 = vadd.f32 0.0, %v606
          %v608 = vpop.f32.mrb[0].mxu0
          %609 = vmatprep.mubr.f32.mxu0 0.0
          %610 = vmatmul.mubr.f32.gmra.mrb[0].mxu0 %v523
          %v611 = vpop.f32.mrb[0].mxu0
          %v612 = vadd.f32 0.0, %v611
          %v613 = vpop.f32.mrb[0].mxu0
          %614 = vdwg.mxu0
          %615 = vst [vmem:[#allocation4] sm:$0xff] %v607
          %616 = vst [vmem:[#allocation4 + $0x8] sm:$0xff] %v612
        $region72: #{tpu_custom_call.1} parent=43 // pred_fallthru
          _
        // Predicated region
        $region73: #{tpu_custom_call.1} parent=43 // pred_check
          %p617 = pneg %p517
        $region74: #{tpu_custom_call.1} parent=43 // pred_check_branch
          %619 = sbr.rel (%p617) target = $region76
        $region75: #{tpu_custom_call.1} parent=43 // pred_region
          %v620 = vld [vmem:[#allocation5] sm:$0xff]
          %v621 = vld [vmem:[#allocation5 + $0x8] sm:$0xff]
          %v622 = vld [vmem:[#allocation4] sm:$0xff]
          %v623 = vld [vmem:[#allocation4 + $0x8] sm:$0xff]
          %v624 = vld [vmem:[%s5] sm:$0x1]
          %v626 = vlaneseq
          %v627 = vshrl.u32 %v626, 7
          %v628 = vsub.s32 0, %v627
          %v629 = vrot.slane %v624, %v628
          %vm631 = vcmask 130048
          %v633 = vsel %vm631, %v620, 0
          %v636 = vsel %vm631, %v621, 0
          %638 = vmatprep.subr.mxu0 0.0
          %639 = vmatpush1.msra.mxu0 %v622
          %640 = vmatprep.subr.mxu0 0.0
          %641 = vmatpush1.msra.mxu0 %v623
          %642 = vmatprep.subr.mxu0 0.0
          %643 = vmatpush1.msra.mxu0 0.0
          %644 = vmatprep.subr.mxu0 0.0
          %645 = vmatpush1.msra.mxu0 0.0
          %646 = vmatprep.subr.mxu0 0.0
          %647 = vmatpush1.msra.mxu0 0.0
          %648 = vmatprep.subr.mxu0 0.0
          %649 = vmatpush1.msra.mxu0 0.0
          %650 = vmatprep.subr.mxu0 0.0
          %651 = vmatpush1.msra.mxu0 0.0
          %652 = vmatprep.subr.mxu0 0.0
          %653 = vmatpush1.msra.mxu0 0.0
          %654 = vmatprep.subr.mxu0 0.0
          %655 = vmatpush1.msra.mxu0 0.0
          %656 = vmatprep.subr.mxu0 0.0
          %657 = vmatpush1.msra.mxu0 0.0
          %658 = vmatprep.subr.mxu0 0.0
          %659 = vmatpush1.msra.mxu0 0.0
          %660 = vmatprep.subr.mxu0 0.0
          %661 = vmatpush1.msra.mxu0 0.0
          %662 = vmatprep.subr.mxu0 0.0
          %663 = vmatpush1.msra.mxu0 0.0
          %664 = vmatprep.subr.mxu0 0.0
          %665 = vmatpush1.msra.mxu0 0.0
          %666 = vmatprep.subr.mxu0 0.0
          %667 = vmatpush1.msra.mxu0 0.0
          %668 = vmatprep.subr.mxu0 0.0
          %669 = vmatpush1.msra.mxu0 0.0
          %670 = vmatprep.subr.mxu0 0.0
          %671 = vmatpush1.msra.mxu0 0.0
          %672 = vmatprep.subr.mxu0 0.0
          %673 = vmatpush1.msra.mxu0 0.0
          %674 = vmatprep.subr.mxu0 0.0
          %675 = vmatpush1.msra.mxu0 0.0
          %676 = vmatprep.subr.mxu0 0.0
          %677 = vmatpush1.msra.mxu0 0.0
          %678 = vmatprep.subr.mxu0 0.0
          %679 = vmatpush1.msra.mxu0 0.0
          %680 = vmatprep.subr.mxu0 0.0
          %681 = vmatpush1.msra.mxu0 0.0
          %682 = vmatprep.subr.mxu0 0.0
          %683 = vmatpush1.msra.mxu0 0.0
          %684 = vmatprep.subr.mxu0 0.0
          %685 = vmatpush1.msra.mxu0 0.0
          %686 = vmatprep.subr.mxu0 0.0
          %687 = vmatpush1.msra.mxu0 0.0
          %688 = vmatprep.subr.mxu0 0.0
          %689 = vmatpush1.msra.mxu0 0.0
          %690 = vmatprep.subr.mxu0 0.0
          %691 = vmatpush1.msra.mxu0 0.0
          %692 = vmatprep.subr.mxu0 0.0
          %693 = vmatpush1.msra.mxu0 0.0
          %694 = vmatprep.subr.mxu0 0.0
          %695 = vmatpush1.msra.mxu0 0.0
          %696 = vmatprep.subr.mxu0 0.0
          %697 = vmatpush1.msra.mxu0 0.0
          %698 = vmatprep.subr.mxu0 0.0
          %699 = vmatpush1.msra.mxu0 0.0
          %700 = vmatprep.subr.mxu0 0.0
          %701 = vmatpush1.msra.mxu0 0.0
          %702 = vmatprep.mubr.f32.mxu0 0.0
          %703 = vmatmul.mubr.f32.gmra.mrb[0].mxu0 %v633
          %v704 = vpop.f32.mrb[0].mxu0
          %v705 = vadd.f32 %v629, %v704
          %v706 = vpop.f32.mrb[0].mxu0
          %707 = vmatprep.mubr.f32.mxu0 0.0
          %708 = vmatmul.mubr.f32.gmra.mrb[0].mxu0 %v636
          %v709 = vpop.f32.mrb[0].mxu0
          %v710 = vadd.f32 %v629, %v709
          %v711 = vpop.f32.mrb[0].mxu0
          %712 = vdwg.mxu0
          %713 = vst [vmem:[%s310] sm:$0xff] %v705
          %714 = vst [vmem:[%s310 + $0x8] sm:$0xff] %v710
        $region76: #{tpu_custom_call.1} parent=43 // pred_fallthru
          _
        %s715 = sand.u32 %s176, 1
        %s716 = scalar_lea.sflag [#allocation7], %s715
        %s717 = sand.u32 %s176, 1
        %s718 = smul.addr %s717, 16
        %s719 = scalar_lea.vmem [#allocation13], %s718
        // Predicated region
        $region77: #{tpu_custom_call.1} parent=43 // pred_check
          %p720 = pneg %p186
        $region78: #{tpu_custom_call.1} parent=43 // pred_check_branch
          %722 = sbr.rel (%p720) target = $region80
        $region79: #{tpu_custom_call.1} parent=43 // pred_region
          %s723 = smul.u32 %s28, %s27
          %s724 = smul.u32 2, %s723
          %s726 = ssub.s32 256, 256
          %727 = vsyncadd %s716, %s726
          %s728 = smul.addr %s724, 128
          %s729 = scalar_lea.hbm %s6, %s728
          %s730 = sshll.u32 %s719, 4
          %s731 = int_to_ptr.vmem [resolvable:$true] %s730
          %736 = dma.vmem_to_hbm [thread:$0]  %s731, 256, %s729, %s716, 128, 128, 8
        $region80: #{tpu_custom_call.1} parent=43 // pred_fallthru
          _
      $region44: #{tpu_custom_call.1} parent=5 // pred_fallthru
        _
      %p737 = scmp.le.s32.totalorder 2, %s18
      // Predicated region
      $region81: #{tpu_custom_call.1} parent=5 // pred_check
        %p738 = pneg %p737
      $region82: #{tpu_custom_call.1} parent=5 // pred_check_branch
        %740 = sbr.rel (%p738) target = $region84
      $region83: #{tpu_custom_call.1} parent=5 // pred_region
        %s741 = ssub.s32 %s18, 2
        // Predicated region
        $region85: #{tpu_custom_call.1} parent=83 // pred_check
          %p742 = pneg %p192
        $region86: #{tpu_custom_call.1} parent=83 // pred_check_branch
          %744 = sbr.rel (%p742) target = $region88
        $region87: #{tpu_custom_call.1} parent=83 // pred_region
          %s745 = sand.u32 %s177, 1
          %s746 = scalar_lea.sflag [#allocation7], %s745
          %s747 = sand.u32 %s177, 1
          %s748 = smul.addr %s747, 16
          %s749 = scalar_lea.vmem [#allocation13], %s748
          %750 = dma.done %s746, 256
        $region88: #{tpu_custom_call.1} parent=83 // pred_fallthru
          _
      $region84: #{tpu_custom_call.1} parent=5 // pred_fallthru
        _
    $region6: #{tpu_custom_call.1} parent=1 // loop_footer
      %s22 = sadd.s32 1, %s18
    $region7: #{tpu_custom_call.1} parent=1 // loop_footer_branch
      %17 = sbr.rel target = $region3
    $region8: #{tpu_custom_call.1} parent=1 // loop_exit
      _
    %751 = vsyncpa [#allocation6], 1
    %s752 = scalar_lea.sflag [#allocation6], 1
    %753 = vsyncpa %s752, 1
    %754 = vsyncpa [#allocation9], 1
    %755 = vsyncpa [#allocation12], 1
    %756 = vsyncpa [#allocation7], 1
    %s757 = scalar_lea.sflag [#allocation7], 1
    %758 = vsyncpa %s757, 1

</llo_original>
